<compile_context>
chip_gen: v5e
topology: v5e:2x2
jax: 0.10.0
libtpu: 0.0.40
codegen_flags: <defaults>
</compile_context>

<pallas_src>
import functools

import jax
import jax.numpy as jnp
from jax.experimental import pallas as pl
from jax.experimental.pallas import tpu as pltpu


# -----------------------------------------------------------------------------
# Pallas kernel:
#   o[n, ch, p] = (2/S) * a[n, ch, p] * sum_s( c[n, s, p] * e[n, ch, s, p] )
# Blocks:  a (1, 3, tP), c (1, S, tP), e (1, 3, S, tP), o (1, 3, tP)
# -----------------------------------------------------------------------------
def _shade_kernel(a_ref, c_ref, e_ref, o_ref, *, inv_half_samples):
    a = a_ref[...].astype(jnp.float32)            # (1, 3, tP)
    c = c_ref[...].astype(jnp.float32)            # (1, S, tP)
    e = e_ref[...].astype(jnp.float32)            # (1, 3, S, tP)
    # cos_t broadcast over channels happens here (in vregs), never in HBM.
    s = jnp.sum(c[:, None, :, :] * e, axis=2)     # (1, 3, tP)
    o_ref[...] = (inv_half_samples * a * s).astype(o_ref.dtype)


def shade_pallas(albedo, cos_t, envmap, samples, *, block_p=512, input_dtype=None):
    """albedo (N,3,H,W) f32, cos_t (N,S,H,W), envmap (N,3,S,H,W) -> final (N,3,H,W) f32.

    input_dtype: optional narrower dtype (e.g. jnp.bfloat16) for cos_t/envmap at the
    pallas_call boundary; accumulation inside the kernel remains float32.
    """
    N, C, S, H, W = envmap.shape
    P = H * W

    # Lane-dense layout: flatten spatial dims onto the lane axis.
    a_flat = albedo.reshape(N, C, P)
    c_flat = cos_t.reshape(N, S, P)
    e_flat = envmap.reshape(N, C, S, P)

    if input_dtype is not None:
        c_flat = c_flat.astype(input_dtype)
        e_flat = e_flat.astype(input_dtype)

    # Spatial tile: a multiple of 128 lanes, capped at block_p.
    if P >= block_p:
        tP = block_p
    else:
        tP = ((P + 127) // 128) * 128
    n_tiles = (P + tP - 1) // tP
    P_pad = n_tiles * tP
    if P_pad != P:
        a_flat = jnp.pad(a_flat, ((0, 0), (0, 0), (0, P_pad - P)))
        c_flat = jnp.pad(c_flat, ((0, 0), (0, 0), (0, P_pad - P)))
        e_flat = jnp.pad(e_flat, ((0, 0), (0, 0), (0, 0), (0, P_pad - P)))

    kernel = functools.partial(_shade_kernel, inv_half_samples=2.0 / float(samples))

    out_flat = pl.pallas_call(
        kernel,
        out_shape=jax.ShapeDtypeStruct((N, C, P_pad), jnp.float32),
        grid_spec=pl.GridSpec(
            grid=(N, n_tiles),
            in_specs=[
                pl.BlockSpec((1, C, tP), lambda n, t: (n, 0, t)),
                pl.BlockSpec((1, S, tP), lambda n, t: (n, 0, t)),
                pl.BlockSpec((1, C, S, tP), lambda n, t: (n, 0, 0, t)),
            ],
            out_specs=pl.BlockSpec((1, C, tP), lambda n, t: (n, 0, t)),
        ),
        compiler_params=pltpu.CompilerParams(
            dimension_semantics=("parallel", "parallel")),
    )(a_flat, c_flat, e_flat)

    if P_pad != P:
        out_flat = out_flat[:, :, :P]
    return out_flat.reshape(N, C, H, W)


# -----------------------------------------------------------------------------
# Texture sampling glue (PyTorch F.grid_sample, bilinear, zeros padding,
# align_corners=False).  Data-dependent gather -> plain JAX.
# TODO(synk): gather-based bilinear texture fetch has no clean Pallas/TPU mapping.
# -----------------------------------------------------------------------------
def grid_sample_bilinear(tex, uv):
    """tex: (C, Ht, Wt) float32, uv: (N, H, W, 2) in [-1, 1] -> (N, C, H, W)."""
    C, Ht, Wt = tex.shape
    x = (uv[..., 0] + 1.0) * Wt / 2.0 - 0.5
    y = (uv[..., 1] + 1.0) * Ht / 2.0 - 0.5
    x0 = jnp.floor(x)
    y0 = jnp.floor(y)
    x1 = x0 + 1.0
    y1 = y0 + 1.0
    wx1 = x - x0
    wx0 = 1.0 - wx1
    wy1 = y - y0
    wy0 = 1.0 - wy1

    def gather(xi, yi):
        inb = ((xi >= 0) & (xi < Wt) & (yi >= 0) & (yi < Ht)).astype(tex.dtype)
        xc = jnp.clip(xi, 0, Wt - 1).astype(jnp.int32)
        yc = jnp.clip(yi, 0, Ht - 1).astype(jnp.int32)
        vals = tex[:, yc, xc]          # (C, N, H, W)
        return vals * inb[None]

    out = (gather(x0, y0) * (wx0 * wy0)[None]
           + gather(x1, y0) * (wx1 * wy0)[None]
           + gather(x0, y1) * (wx0 * wy1)[None]
           + gather(x1, y1) * (wx1 * wy1)[None])
    return jnp.transpose(out, (1, 0, 2, 3))   # (N, C, H, W)


# -----------------------------------------------------------------------------
# PipeLineTex forward (JAX)
# -----------------------------------------------------------------------------
def pipeline_tex_forward(params, wi, cos_t, envmap, uv_map, samples):
    # wi is reshaped in the original module but never used afterwards.
    _ = wi.reshape(-1, 2 * samples, wi.shape[3], wi.shape[4])

    N, S, H, W = cos_t.shape

    # albedo_tex = cat(layer1 of each channel, dim=1) -> (1, 3, Ht, Wt)
    # (each layer1 parameter is (1, 1, Ht, Wt), as in the PyTorch Texture module).
    albedo_tex = jnp.concatenate(params["layers"], axis=1)

    # Bilinear texture fetch (grid_sample) -> (N, 3, H, W).
    albedo = grid_sample_bilinear(albedo_tex[0], uv_map)

    # Shading hot path in Pallas: untiled cos_t goes in; channel broadcast is done
    # inside the kernel, so the 3x-tiled cos_t never touches the kernel's HBM path.
    final = shade_pallas(albedo, cos_t, envmap, samples)

    # Module contract returns the channel-tiled cos_t; produced by a cheap broadcast
    # OUTSIDE the hot path (the kernel never reads this back).
    cos_t_tiled = jnp.broadcast_to(cos_t[:, None], (N, 3, S, H, W))

    return albedo_tex, albedo, final, cos_t_tiled


# -----------------------------------------------------------------------------
# Pure-JAX reference for the shading hot path (correctness check)
# -----------------------------------------------------------------------------
def shade_reference(albedo, cos_t_tiled, envmap, samples):
    albedo_ = jnp.tile(albedo[:, :, None, :, :], (1, 1, cos_t_tiled.shape[2], 1, 1))
    final = albedo_ * cos_t_tiled * envmap
    return 2.0 / float(samples) * jnp.sum(final, axis=2)


if __name__ == "__main__":
    # Small deterministic shapes: N=2, samples S=4, image 16x16, texture base 8x8
    # (module doubles it -> 16x16 texture).
    N, S, H, W = 2, 4, 16, 16
    tex_W, tex_H = 8, 8
    Ht, Wt = tex_H * 2, tex_W * 2

    key = jax.random.PRNGKey(0)
    k_wi, k_cos, k_env, k_uv, k_t0, k_t1, k_t2 = jax.random.split(key, 7)

    wi = jax.random.normal(k_wi, (N, 2, S, H, W), dtype=jnp.float32)
    cos_t = jax.random.uniform(k_cos, (N, S, H, W), dtype=jnp.float32)
    envmap = jax.random.uniform(k_env, (N, 3, S, H, W), dtype=jnp.float32)
    uv_map = jax.random.uniform(k_uv, (N, H, W, 2), dtype=jnp.float32,
                                minval=-0.9, maxval=0.9)

    # Deterministic texture parameters: 3 per-channel layer1 maps of shape (1,1,Ht,Wt).
    params = {
        "layers": [
            jax.random.normal(k_t0, (1, 1, Ht, Wt), dtype=jnp.float32),
            jax.random.normal(k_t1, (1, 1, Ht, Wt), dtype=jnp.float32),
            jax.random.normal(k_t2, (1, 1, Ht, Wt), dtype=jnp.float32),
        ]
    }

    fwd = jax.jit(functools.partial(pipeline_tex_forward, samples=S))
    albedo_tex, albedo, final, cos_t_out = fwd(params, wi, cos_t, envmap, uv_map)
    jax.block_until_ready((albedo_tex, albedo, final, cos_t_out))

    # Verify the Pallas hot path against the pure-JAX reference.
    ref = shade_reference(albedo, cos_t_out, envmap, S)
    err = float(jnp.max(jnp.abs(ref - final)))
    assert err < 1e-5, f"mismatch vs reference: {err}"

    assert albedo_tex.shape == (1, 3, Ht, Wt)
    assert albedo.shape == (N, 3, H, W)
    assert final.shape == (N, 3, H, W)
    assert cos_t_out.shape == (N, 3, S, H, W)

    print("KERNEL_OK")
</pallas_src>

<mosaic_0001>
module attributes {stable_mosaic.version = 11 : i64} {
  func.func @_shade_kernel(%arg0: i32, %arg1: i32, %arg2: memref<1x3x256xf32, #tpu.memory_space<vmem>>, %arg3: memref<1x4x256xf32, #tpu.memory_space<vmem>>, %arg4: memref<1x3x4x256xf32, #tpu.memory_space<vmem>>, %arg5: memref<1x3x256xf32, #tpu.memory_space<vmem>>) attributes {dimension_semantics = [#tpu.dimension_semantics<parallel>, #tpu.dimension_semantics<parallel>], iteration_bounds = array<i64: 2, 1>, scalar_prefetch = 0 : i64, scratch_operands = 0 : i64, tpu.core_type = #tpu.core_type<tc>, window_params = [{transform_indices = @transform_0, window_bounds = array<i64: 1, 3, 256>}, {transform_indices = @transform_1, window_bounds = array<i64: 1, 4, 256>}, {transform_indices = @transform_2, window_bounds = array<i64: 1, 3, 4, 256>}, {transform_indices = @transform_3, window_bounds = array<i64: 1, 3, 256>}]} {
    %c0 = arith.constant 0 : index
    %c0_0 = arith.constant 0 : index
    %c0_1 = arith.constant 0 : index
    %0 = vector.load %arg2[%c0, %c0_0, %c0_1] : memref<1x3x256xf32, #tpu.memory_space<vmem>>, vector<1x3x256xf32>
    %c0_2 = arith.constant 0 : index
    %c0_3 = arith.constant 0 : index
    %c0_4 = arith.constant 0 : index
    %1 = vector.load %arg3[%c0_2, %c0_3, %c0_4] : memref<1x4x256xf32, #tpu.memory_space<vmem>>, vector<1x4x256xf32>
    %c0_5 = arith.constant 0 : index
    %c0_6 = arith.constant 0 : index
    %c0_7 = arith.constant 0 : index
    %c0_8 = arith.constant 0 : index
    %2 = vector.load %arg4[%c0_5, %c0_6, %c0_7, %c0_8] : memref<1x3x4x256xf32, #tpu.memory_space<vmem>>, vector<1x3x4x256xf32>
    %3 = vector.shape_cast %1 : vector<1x4x256xf32> to vector<1x1x4x256xf32>
    %4 = vector.broadcast %3 : vector<1x1x4x256xf32> to vector<1x3x4x256xf32>
    %5 = arith.mulf %4, %2 : vector<1x3x4x256xf32>
    %cst = arith.constant dense<0.000000e+00> : vector<1x3x256xf32>
    %6 = vector.multi_reduction <add>, %5, %cst [2] : vector<1x3x4x256xf32> to vector<1x3x256xf32>
    %cst_9 = arith.constant 5.000000e-01 : f32
    %7 = vector.broadcast %cst_9 : f32 to vector<1x3x256xf32>
    %8 = arith.mulf %7, %0 : vector<1x3x256xf32>
    %9 = arith.mulf %8, %6 : vector<1x3x256xf32>
    %c0_10 = arith.constant 0 : index
    %c0_11 = arith.constant 0 : index
    %c0_12 = arith.constant 0 : index
    %10 = vector.load %arg5[%c0_10, %c0_11, %c0_12] : memref<1x3x256xf32, #tpu.memory_space<vmem>>, vector<1x3x256xf32>
    tpu.vector_store %arg5[%c0_10, %c0_11, %c0_12], %9 {strides = array<i32>} : memref<1x3x256xf32, #tpu.memory_space<vmem>>, vector<1x3x256xf32>,
    return
  }
  func.func @transform_0(%arg0: i32, %arg1: i32) -> (i32, i32, i32) {
    %c0_i32 = arith.constant 0 : i32
    %c0_i32_0 = arith.constant 0 : i32
    return %arg0, %c0_i32, %arg1 : i32, i32, i32
  }
  func.func @transform_1(%arg0: i32, %arg1: i32) -> (i32, i32, i32) {
    %c0_i32 = arith.constant 0 : i32
    %c0_i32_0 = arith.constant 0 : i32
    return %arg0, %c0_i32, %arg1 : i32, i32, i32
  }
  func.func @transform_2(%arg0: i32, %arg1: i32) -> (i32, i32, i32, i32) {
    %c0_i32 = arith.constant 0 : i32
    %c0_i32_0 = arith.constant 0 : i32
    %c0_i32_1 = arith.constant 0 : i32
    return %arg0, %c0_i32, %c0_i32_0, %arg1 : i32, i32, i32, i32
  }
  func.func @transform_3(%arg0: i32, %arg1: i32) -> (i32, i32, i32) {
    %c0_i32 = arith.constant 0 : i32
    %c0_i32_0 = arith.constant 0 : i32
    return %arg0, %c0_i32, %arg1 : i32, i32, i32
  }
}

</mosaic_0001>

<llo_original>
// kernel: pipeline_tex_forward.1
$region0: #{pipeline_tex_forward.1}
  #allocation0 [shape = 'u32[]', space=smem, size = 0x4, offset = 0x4, fixed_abs, tag = 'smem constant byte address 0x4 - core index']
  #allocation1 [shape = 'u32[72,128]{1,0:T(1,128)}', space=vmem, size = 0x9000, scoped, tag = 'internal scratch']
  %s0 = inlined_call_operand.vmem [shape: f32[2,3,256], index: 0, kind: input, shape index: {}]
  %s1 = inlined_call_operand.vmem [shape: f32[2,4,256], index: 1, kind: input, shape index: {}]
  %s2 = inlined_call_operand.vmem [shape: f32[2,3,4,256], index: 2, kind: input, shape index: {}]
  %s3 = inlined_call_operand.vmem [shape: f32[2,3,256], index: 3, kind: output, shape index: {}]
  %s4 = sld [smem:[#allocation0]]
  $region45: #{pipeline_tex_forward.1} parent=0
    _
  %s6 = ssub.s32 1, %s4
  %s7 = scalar_select 0, %s6, %s4
  loop: start=0, step=1, limit=4
  $region2: #{pipeline_tex_forward.1} parent=0 // loop_pre_header
    _
  $region3: #{pipeline_tex_forward.1} parent=0 // loop_header
    %s9 = sphi 0, %s13
    %p10 = scmp.ge.s32.totalorder %s9, 4
    %s16 = sphi 0, %s28
    %s17 = sphi 0, %s24
    %s18 = sphi 0, %s16
    %s19 = sphi 0, %s17
    %s20 = sphi 0, %s18
    %s21 = sphi 0, %s19
    %s33 = sphi 0, %s35
    %s36 = sphi 0, %s33
    %s37 = sphi 0, %s36
    %s53 = sphi 0, %s37
    %s61 = sphi 0, %s63
    %s64 = sphi 0, %s61
    %s65 = sphi 0, %s64
    %s81 = sphi 0, %s65
    %s89 = sphi 0, %s91
    %s92 = sphi 0, %s89
    %s93 = sphi 0, %s92
    %s109 = sphi 0, %s93
    %s117 = sphi 0, %s119
    %s120 = sphi 0, %s117
    %s121 = sphi 0, %s120
    %s137 = sphi 0, %s121
  $region4: #{pipeline_tex_forward.1} parent=0 // loop_header_branch
    %12 = sbr.rel (%p10) target = $region8
  $region5: #{pipeline_tex_forward.1} parent=0 // loop_body
    %s14 = ssub.s32 %s9, 1
    %s15 = ssub.s32 %s9, 2
    %s22 = sadd.s32 1, %s17
    %p23 = scmp.ge.s32.totalorder %s22, 1
    %s24 = scalar_select %p23, 0, %s22
    %s25 = sadd.s32 1, %s16
    %s26 = scalar_select %p23, %s25, %s16
    %p27 = scmp.ge.s32.totalorder %s26, 2
    %s28 = scalar_select %p27, 0, %s26
    %s29 = ssub.s32 %s16, %s28
    %s30 = ssub.s32 %s17, %s24
    %s31 = sor.u32 %s29, %s30
    %p32 = scmp.eq.s32.totalorder %s31, 0
    %s34 = sadd.s32 %s33, 1
    %s35 = scalar_select %p32, %s33, %s34
    %p38 = pneg %p32
    %p39 = scmp.eq.s32.totalorder %s9, 1
    %p40 = por %p38, %p39
    %p41 = scmp.ne.s32.totalorder %s33, %s36
    %p42 = scmp.eq.s32.totalorder %s9, 0
    %p43 = por %p41, %p42
    %p44 = scmp.ne.s32.totalorder %s33, %s36
    %p45 = scmp.eq.s32.totalorder %s14, 1
    %p46 = por %p44, %p45
    %p47 = scmp.ne.s32.totalorder %s36, %s37
    %p48 = scmp.eq.s32.totalorder %s14, 0
    %p49 = por %p47, %p48
    %p50 = scmp.ne.s32.totalorder %s36, %s37
    %p51 = scmp.eq.s32.totalorder %s15, 1
    %p52 = por %p50, %p51
    %p54 = scmp.ne.s32.totalorder %s37, %s53
    %p55 = scmp.eq.s32.totalorder %s15, 0
    %p56 = por %p54, %p55
    %s57 = ssub.s32 %s16, %s28
    %s58 = ssub.s32 %s17, %s24
    %s59 = sor.u32 %s57, %s58
    %p60 = scmp.eq.s32.totalorder %s59, 0
    %s62 = sadd.s32 %s61, 1
    %s63 = scalar_select %p60, %s61, %s62
    %p66 = pneg %p60
    %p67 = scmp.eq.s32.totalorder %s9, 1
    %p68 = por %p66, %p67
    %p69 = scmp.ne.s32.totalorder %s61, %s64
    %p70 = scmp.eq.s32.totalorder %s9, 0
    %p71 = por %p69, %p70
    %p72 = scmp.ne.s32.totalorder %s61, %s64
    %p73 = scmp.eq.s32.totalorder %s14, 1
    %p74 = por %p72, %p73
    %p75 = scmp.ne.s32.totalorder %s64, %s65
    %p76 = scmp.eq.s32.totalorder %s14, 0
    %p77 = por %p75, %p76
    %p78 = scmp.ne.s32.totalorder %s64, %s65
    %p79 = scmp.eq.s32.totalorder %s15, 1
    %p80 = por %p78, %p79
    %p82 = scmp.ne.s32.totalorder %s65, %s81
    %p83 = scmp.eq.s32.totalorder %s15, 0
    %p84 = por %p82, %p83
    %s85 = ssub.s32 %s16, %s28
    %s86 = ssub.s32 %s17, %s24
    %s87 = sor.u32 %s85, %s86
    %p88 = scmp.eq.s32.totalorder %s87, 0
    %s90 = sadd.s32 %s89, 1
    %s91 = scalar_select %p88, %s89, %s90
    %p94 = pneg %p88
    %p95 = scmp.eq.s32.totalorder %s9, 1
    %p96 = por %p94, %p95
    %p97 = scmp.ne.s32.totalorder %s89, %s92
    %p98 = scmp.eq.s32.totalorder %s9, 0
    %p99 = por %p97, %p98
    %p100 = scmp.ne.s32.totalorder %s89, %s92
    %p101 = scmp.eq.s32.totalorder %s14, 1
    %p102 = por %p100, %p101
    %p103 = scmp.ne.s32.totalorder %s92, %s93
    %p104 = scmp.eq.s32.totalorder %s14, 0
    %p105 = por %p103, %p104
    %p106 = scmp.ne.s32.totalorder %s92, %s93
    %p107 = scmp.eq.s32.totalorder %s15, 1
    %p108 = por %p106, %p107
    %p110 = scmp.ne.s32.totalorder %s93, %s109
    %p111 = scmp.eq.s32.totalorder %s15, 0
    %p112 = por %p110, %p111
    %s113 = ssub.s32 %s16, %s28
    %s114 = ssub.s32 %s17, %s24
    %s115 = sor.u32 %s113, %s114
    %p116 = scmp.eq.s32.totalorder %s115, 0
    %s118 = sadd.s32 %s117, 1
    %s119 = scalar_select %p116, %s117, %s118
    %p122 = pneg %p116
    %p123 = scmp.eq.s32.totalorder %s9, 1
    %p124 = por %p122, %p123
    %p125 = scmp.ne.s32.totalorder %s117, %s120
    %p126 = scmp.eq.s32.totalorder %s9, 0
    %p127 = por %p125, %p126
    %p128 = scmp.ne.s32.totalorder %s117, %s120
    %p129 = scmp.eq.s32.totalorder %s14, 1
    %p130 = por %p128, %p129
    %p131 = scmp.ne.s32.totalorder %s120, %s121
    %p132 = scmp.eq.s32.totalorder %s14, 0
    %p133 = por %p131, %p132
    %p134 = scmp.ne.s32.totalorder %s120, %s121
    %p135 = scmp.eq.s32.totalorder %s15, 1
    %p136 = por %p134, %p135
    %p138 = scmp.ne.s32.totalorder %s121, %s137
    %p139 = scmp.eq.s32.totalorder %s15, 0
    %p140 = por %p138, %p139
    %p141 = scmp.le.s32.totalorder 1, %s9
    %p142 = scmp.lt.s32.totalorder %s9, 3
    %p143 = pnand %p141, %p142
    %p144 = pneg %p143
    // Predicated region
    $region9: #{pipeline_tex_forward.1} parent=5 // pred_check
      _
    $region10: #{pipeline_tex_forward.1} parent=5 // pred_check_branch
      %146 = sbr.rel (%p143) target = $region12
    $region11: #{pipeline_tex_forward.1} parent=5 // pred_region
      %s147 = ssub.s32 %s9, 1
    $region12: #{pipeline_tex_forward.1} parent=5 // pred_fallthru
      _
    %p148 = scmp.lt.s32.totalorder %s9, 2
    // Predicated region
    $region13: #{pipeline_tex_forward.1} parent=5 // pred_check
      %p149 = pneg %p148
    $region14: #{pipeline_tex_forward.1} parent=5 // pred_check_branch
      %151 = sbr.rel (%p149) target = $region16
    $region15: #{pipeline_tex_forward.1} parent=5 // pred_region
      // Predicated region
      $region17: #{pipeline_tex_forward.1} parent=15 // pred_check
        %p152 = pneg %p43
      $region18: #{pipeline_tex_forward.1} parent=15 // pred_check_branch
        %154 = sbr.rel (%p152) target = $region20
      $region19: #{pipeline_tex_forward.1} parent=15 // pred_region
        %s155 = smul.u32 2, %s17
        %p156 = scmp.lt.s32.totalorder %s16, 1
        %s157 = scalar_select %p156, %s16, 1
        %p158 = scmp.lt.s32.totalorder %s155, 1
        %s159 = scalar_select %p158, %s155, 1
        %s160 = smul.addr %s157, 2
        %s161 = sadd.s32 %s159, %s160
        %s162 = smul.addr %s161, 4
        %s163 = scalar_lea.vmem %s0, %s162
        %s164 = smul.u32 2, %s17
      $region20: #{pipeline_tex_forward.1} parent=15 // pred_fallthru
        _
      // Predicated region
      $region21: #{pipeline_tex_forward.1} parent=15 // pred_check
        %p165 = pneg %p71
      $region22: #{pipeline_tex_forward.1} parent=15 // pred_check_branch
        %167 = sbr.rel (%p165) target = $region24
      $region23: #{pipeline_tex_forward.1} parent=15 // pred_region
        %s168 = smul.u32 2, %s17
        %p169 = scmp.lt.s32.totalorder %s16, 1
        %s170 = scalar_select %p169, %s16, 1
        %p171 = scmp.lt.s32.totalorder %s168, 1
        %s172 = scalar_select %p171, %s168, 1
        %s173 = smul.addr %s170, 2
        %s174 = sadd.s32 %s172, %s173
        %s175 = smul.addr %s174, 4
        %s176 = scalar_lea.vmem %s1, %s175
        %s177 = smul.u32 2, %s17
      $region24: #{pipeline_tex_forward.1} parent=15 // pred_fallthru
        _
      // Predicated region
      $region25: #{pipeline_tex_forward.1} parent=15 // pred_check
        %p178 = pneg %p99
      $region26: #{pipeline_tex_forward.1} parent=15 // pred_check_branch
        %180 = sbr.rel (%p178) target = $region28
      $region27: #{pipeline_tex_forward.1} parent=15 // pred_region
        %s181 = smul.u32 2, %s17
        %p182 = scmp.lt.s32.totalorder %s16, 1
        %s183 = scalar_select %p182, %s16, 1
        %p184 = scmp.lt.s32.totalorder %s181, 1
        %s185 = scalar_select %p184, %s181, 1
        %s186 = smul.addr %s183, 6
        %s187 = sadd.s32 %s185, %s186
        %s188 = smul.addr %s187, 4
        %s189 = scalar_lea.vmem %s2, %s188
        %s190 = smul.u32 2, %s17
      $region28: #{pipeline_tex_forward.1} parent=15 // pred_fallthru
        _
    $region16: #{pipeline_tex_forward.1} parent=5 // pred_fallthru
      _
    %p191 = scmp.le.s32.totalorder 1, %s9
    %p192 = scmp.lt.s32.totalorder %s9, 3
    %p193 = pnand %p191, %p192
    %p194 = pneg %p193
    // Predicated region
    $region29: #{pipeline_tex_forward.1} parent=5 // pred_check
      _
    $region30: #{pipeline_tex_forward.1} parent=5 // pred_check_branch
      %196 = sbr.rel (%p193) target = $region32
    $region31: #{pipeline_tex_forward.1} parent=5 // pred_region
      %s197 = ssub.s32 %s9, 1
      %s198 = smul.u32 2, %s19
      %p199 = scmp.lt.s32.totalorder %s18, 1
      %s200 = scalar_select %p199, %s18, 1
      %p201 = scmp.lt.s32.totalorder %s198, 1
      %s202 = scalar_select %p201, %s198, 1
      %s203 = smul.addr %s200, 2
      %s204 = sadd.s32 %s202, %s203
      %s205 = smul.addr %s204, 4
      %s206 = scalar_lea.vmem %s0, %s205
      %p207 = pneg %p49
      %p208 = pneg %p46
      %s209 = smul.u32 2, %s19
      %p210 = scmp.lt.s32.totalorder %s18, 1
      %s211 = scalar_select %p210, %s18, 1
      %p212 = scmp.lt.s32.totalorder %s209, 1
      %s213 = scalar_select %p212, %s209, 1
      %s214 = smul.addr %s211, 2
      %s215 = sadd.s32 %s213, %s214
      %s216 = smul.addr %s215, 4
      %s217 = scalar_lea.vmem %s1, %s216
      %p218 = pneg %p77
      %p219 = pneg %p74
      %s220 = smul.u32 2, %s19
      %p221 = scmp.lt.s32.totalorder %s18, 1
      %s222 = scalar_select %p221, %s18, 1
      %p223 = scmp.lt.s32.totalorder %s220, 1
      %s224 = scalar_select %p223, %s220, 1
      %s225 = smul.addr %s222, 6
      %s226 = sadd.s32 %s224, %s225
      %s227 = smul.addr %s226, 4
      %s228 = scalar_lea.vmem %s2, %s227
      %p229 = pneg %p105
      %p230 = pneg %p102
      %p231 = pneg %p133
      %p232 = pneg %p130
      %s233 = smul.u32 2, %s19
      %p234 = scmp.lt.s32.totalorder %s18, 1
      %s235 = scalar_select %p234, %s18, 1
      %p236 = scmp.lt.s32.totalorder %s233, 1
      %s237 = scalar_select %p236, %s233, 1
      %s238 = smul.addr %s235, 2
      %s239 = sadd.s32 %s237, %s238
      %s240 = smul.addr %s239, 4
      %s241 = scalar_lea.vmem %s3, %s240
      %s242 = smul.u32 2, %s19
      %p243 = scmp.lt.s32.totalorder %s18, 1
      %s244 = scalar_select %p243, %s18, 1
      %p245 = scmp.lt.s32.totalorder %s242, 1
      %s246 = scalar_select %p245, %s242, 1
      %s247 = smul.addr %s244, 2
      %s248 = sadd.s32 %s246, %s247
      %s249 = smul.addr %s248, 4
      %s250 = scalar_lea.vmem %s0, %s249
      %s251 = smul.u32 2, %s19
      %s252 = smul.u32 2, %s19
      %p253 = scmp.lt.s32.totalorder %s18, 1
      %s254 = scalar_select %p253, %s18, 1
      %p255 = scmp.lt.s32.totalorder %s252, 1
      %s256 = scalar_select %p255, %s252, 1
      %s257 = smul.addr %s254, 2
      %s258 = sadd.s32 %s256, %s257
      %s259 = smul.addr %s258, 4
      %s260 = scalar_lea.vmem %s1, %s259
      %s261 = smul.u32 2, %s19
      %s262 = smul.u32 2, %s19
      %p263 = scmp.lt.s32.totalorder %s18, 1
      %s264 = scalar_select %p263, %s18, 1
      %p265 = scmp.lt.s32.totalorder %s262, 1
      %s266 = scalar_select %p265, %s262, 1
      %s267 = smul.addr %s264, 6
      %s268 = sadd.s32 %s266, %s267
      %s269 = smul.addr %s268, 4
      %s270 = scalar_lea.vmem %s2, %s269
      %s271 = smul.u32 2, %s19
      %s272 = smul.u32 2, %s19
      %p273 = scmp.lt.s32.totalorder %s18, 1
      %s274 = scalar_select %p273, %s18, 1
      %p275 = scmp.lt.s32.totalorder %s272, 1
      %s276 = scalar_select %p275, %s272, 1
      %s277 = smul.addr %s274, 2
      %s278 = sadd.s32 %s276, %s277
      %s279 = smul.addr %s278, 4
      %s280 = scalar_lea.vmem %s3, %s279
      %s281 = smul.u32 2, %s19
      %v282 = vld [vmem:[%s250] sm:$0x77]
      %v283 = vld [vmem:[%s260] sm:$0xff]
      %v284 = vld [vmem:[%s270] sm:$0xff]
      %v285 = vld [vmem:[%s270 + $0x8] sm:$0xff]
      %v286 = vld [vmem:[%s270 + $0x10] sm:$0xff]
      %v287 = vmul.f32 %v283, %v284
      %v288 = vmul.f32 %v283, %v285
      %v289 = vmul.f32 %v283, %v286
      %293 = vst [vmem:[#allocation1] ss:$2 sm:$0xff] %v287
      %v294 = vld.sshfl [vmem:[#allocation1] sm:$0xff pattern:$0x75316420]
      %v295 = vld.sshfl [vmem:[#allocation1 + $0x8] sm:$0xff pattern:$0x75316420]
      %s296 = scalar_lea.vmem [#allocation1], 16
      %297 = vst [vmem:[%s296] ss:$2 sm:$0xff] %v288
      %v298 = vld.sshfl [vmem:[#allocation1 + $0x10] sm:$0xff pattern:$0x75316420]
      %v299 = vld.sshfl [vmem:[#allocation1 + $0x18] sm:$0xff pattern:$0x75316420]
      %s300 = scalar_lea.vmem [#allocation1], 32
      %301 = vst [vmem:[%s300] ss:$2 sm:$0xff] %v289
      %v302 = vld.sshfl [vmem:[#allocation1 + $0x20] sm:$0xff pattern:$0x75316420]
      %v303 = vld.sshfl [vmem:[#allocation1 + $0x28] sm:$0xff pattern:$0x75316420]
      %vm310 = vcmask 1043456
      %v311 = vsel %vm310, %v294, 0.0
      %v312 = vrot.slane %v311, 4
      %v313 = vadd.f32 %v311, %v312
      %v314 = vrot.slane %v313, 2
      %v315 = vadd.f32 %v313, %v314
      %v316 = vrot.slane %v315, 1
      %v317 = vadd.f32 %v315, %v316
      %v318 = vsel %vm310, %v295, 0.0
      %v319 = vrot.slane %v318, 4
      %v320 = vadd.f32 %v318, %v319
      %v321 = vrot.slane %v320, 2
      %v322 = vadd.f32 %v320, %v321
      %v323 = vrot.slane %v322, 1
      %v324 = vadd.f32 %v322, %v323
      %v325 = vsel %vm310, %v298, 0.0
      %v326 = vrot.slane %v325, 4
      %v327 = vadd.f32 %v325, %v326
      %v328 = vrot.slane %v327, 2
      %v329 = vadd.f32 %v327, %v328
      %v330 = vrot.slane %v329, 1
      %v331 = vadd.f32 %v329, %v330
      %v332 = vsel %vm310, %v299, 0.0
      %v333 = vrot.slane %v332, 4
      %v334 = vadd.f32 %v332, %v333
      %v335 = vrot.slane %v334, 2
      %v336 = vadd.f32 %v334, %v335
      %v337 = vrot.slane %v336, 1
      %v338 = vadd.f32 %v336, %v337
      %v339 = vsel %vm310, %v302, 0.0
      %v340 = vrot.slane %v339, 4
      %v341 = vadd.f32 %v339, %v340
      %v342 = vrot.slane %v341, 2
      %v343 = vadd.f32 %v341, %v342
      %v344 = vrot.slane %v343, 1
      %v345 = vadd.f32 %v343, %v344
      %v346 = vsel %vm310, %v303, 0.0
      %v347 = vrot.slane %v346, 4
      %v348 = vadd.f32 %v346, %v347
      %v349 = vrot.slane %v348, 2
      %v350 = vadd.f32 %v348, %v349
      %v351 = vrot.slane %v350, 1
      %v352 = vadd.f32 %v350, %v351
      %v353 = vmul.f32 %v282, 0.5
      %v360 = vrot.slane %v324, 4
      %v361 = vrot.slane %v338, 4
      %v362 = vrot.slane %v352, 4
      %v363 = vsel %vm310, %v317, %v360
      %v364 = vsel %vm310, %v331, %v361
      %v365 = vsel %vm310, %v345, %v362
      %v366 = vrot.slane %v364, 7
      %vm367 = vcmask 1041409
      %v368 = vsel %vm367, %v366, %v363
      %vm369 = vcmask 1045509
      %v370 = vsel %vm369, %v366, %v368
      %v371 = vrot.slane %v365, 6
      %vm372 = vcmask 1042434
      %v373 = vsel %vm372, %v371, %v370
      %vm374 = vcmask 1046534
      %v375 = vsel %vm374, %v371, %v373
      %v377 = vmul.f32 %v353, %v375
      %378 = vst [vmem:[%s280] sm:$0x77] %v377
      %s379 = smul.u32 2, %s19
      %p380 = scmp.lt.s32.totalorder %s18, 1
      %s381 = scalar_select %p380, %s18, 1
      %p382 = scmp.lt.s32.totalorder %s379, 1
      %s383 = scalar_select %p382, %s379, 1
      %s384 = smul.addr %s381, 2
      %s385 = sadd.s32 %s383, %s384
      %s386 = smul.addr %s385, 4
      %s387 = scalar_lea.vmem %s3, %s386
      // Predicated region
      $region33: #{pipeline_tex_forward.1} parent=31 // pred_check
        %p388 = pneg %p130
      $region34: #{pipeline_tex_forward.1} parent=31 // pred_check_branch
        %390 = sbr.rel (%p388) target = $region36
      $region35: #{pipeline_tex_forward.1} parent=31 // pred_region
        %s391 = smul.u32 2, %s19
      $region36: #{pipeline_tex_forward.1} parent=31 // pred_fallthru
        _
    $region32: #{pipeline_tex_forward.1} parent=5 // pred_fallthru
      _
    %p392 = scmp.le.s32.totalorder 2, %s9
    // Predicated region
    $region37: #{pipeline_tex_forward.1} parent=5 // pred_check
      %p393 = pneg %p392
    $region38: #{pipeline_tex_forward.1} parent=5 // pred_check_branch
      %395 = sbr.rel (%p393) target = $region40
    $region39: #{pipeline_tex_forward.1} parent=5 // pred_region
      %s396 = ssub.s32 %s9, 2
      // Predicated region
      $region41: #{pipeline_tex_forward.1} parent=39 // pred_check
        %p397 = pneg %p136
      $region42: #{pipeline_tex_forward.1} parent=39 // pred_check_branch
        %399 = sbr.rel (%p397) target = $region44
      $region43: #{pipeline_tex_forward.1} parent=39 // pred_region
        %s400 = smul.u32 2, %s21
        %p401 = scmp.lt.s32.totalorder %s20, 1
        %s402 = scalar_select %p401, %s20, 1
        %p403 = scmp.lt.s32.totalorder %s400, 1
        %s404 = scalar_select %p403, %s400, 1
        %s405 = smul.addr %s402, 2
        %s406 = sadd.s32 %s404, %s405
        %s407 = smul.addr %s406, 4
        %s408 = scalar_lea.vmem %s3, %s407
      $region44: #{pipeline_tex_forward.1} parent=39 // pred_fallthru
        _
    $region40: #{pipeline_tex_forward.1} parent=5 // pred_fallthru
      _
  $region6: #{pipeline_tex_forward.1} parent=0 // loop_footer
    %s13 = sadd.s32 1, %s9
  $region7: #{pipeline_tex_forward.1} parent=0 // loop_footer_branch
    %8 = sbr.rel target = $region3
  $region8: #{pipeline_tex_forward.1} parent=0 // loop_exit
    _

</llo_original>
